<compile_context>
chip_gen: v7x
topology: tpu7x:2x2x1
jax: 0.10.0
libtpu: 0.0.40
codegen_flags: <defaults>
</compile_context>

<pallas_src>
import jax
import jax.numpy as jnp
from jax.experimental import pallas as pl
from jax.experimental.pallas import tpu as pltpu

D_IN, D_H, D_EMB = 130, 64, 32

MAX_BATCH_TILE = 2048   # double-buffered x/emb/recon tiles ~4.8 MiB << scoped VMEM
MIN_BATCH_TILE = 256    # multiple of 8 (f32 sublane) and of the MXU height


def _autoencoder_kernel(x_ref, w1_ref, b1_ref, w2_ref, b2_ref, w3_ref, b3_ref,
                        emb_ref, recon_ref):
    # Whole hot path (3 matmuls + bias adds + LeakyReLU) runs on-chip in f32.
    x = x_ref[...]

    h = jnp.dot(x, w1_ref[...], preferred_element_type=jnp.float32) + b1_ref[...]
    # LeakyReLU, default negative_slope = 0.01 (matches nn.LeakyReLU()).
    h = jnp.where(h > 0, h, 0.01 * h)

    emb = jnp.dot(h, w2_ref[...], preferred_element_type=jnp.float32) + b2_ref[...]
    recon = jnp.dot(emb, w3_ref[...], preferred_element_type=jnp.float32) + b3_ref[...]

    emb_ref[...] = emb.astype(emb_ref.dtype)
    recon_ref[...] = recon.astype(recon_ref.dtype)


def _pick_batch_tile(B):
    """Tile big enough to amortize per-step overhead, small enough that the
    grid has >= ~8 steps for large B (v7x megacore + pipelining)."""
    if B <= MIN_BATCH_TILE:
        return B                      # single tile; block == full array extent
    bm = pl.cdiv(B, 8)                # aim for >= 8 grid steps
    bm = ((bm + MIN_BATCH_TILE - 1) // MIN_BATCH_TILE) * MIN_BATCH_TILE
    return max(MIN_BATCH_TILE, min(bm, MAX_BATCH_TILE))


def autoencoder_forward(x, params, *, batch_tile=None, out_dtype=jnp.float32):
    """Runs the autoencoder. x: (B, 130) float32. Returns (emb, recon).

    batch_tile: rows per grid step (default: auto-picked, multiple of 256).
    out_dtype: keep f32 to match PyTorch; bf16 halves the dominant write stream.
    """
    w1, b1, w2, b2, w3, b3 = params
    B = x.shape[0]

    bm = _pick_batch_tile(B) if batch_tile is None else min(batch_tile, B)
    grid = (pl.cdiv(B, bm),)

    # Weights/biases are tiny; constant index_map -> resident across the grid.
    def full(a):
        return pl.BlockSpec(a.shape, lambda i: (0,) * a.ndim)

    emb, recon = pl.pallas_call(
        _autoencoder_kernel,
        out_shape=(
            jax.ShapeDtypeStruct((B, D_EMB), out_dtype),
            jax.ShapeDtypeStruct((B, D_IN), out_dtype),
        ),
        grid_spec=pltpu.PrefetchScalarGridSpec(
            num_scalar_prefetch=0,
            grid=grid,
            in_specs=[
                # x streams straight from HBM in f32 (no wrapper-side cast).
                pl.BlockSpec((bm, D_IN), lambda i: (i, 0)),
                full(w1), full(b1),
                full(w2), full(b2),
                full(w3), full(b3),
            ],
            out_specs=[
                pl.BlockSpec((bm, D_EMB), lambda i: (i, 0)),
                pl.BlockSpec((bm, D_IN), lambda i: (i, 0)),
            ],
        ),
        compiler_params=pltpu.CompilerParams(
            # Batch axis is embarrassingly parallel -> shard across the two
            # TensorCores on v7x; free on v5e/v6e.
            dimension_semantics=("parallel",)),
    )(x, w1, b1, w2, b2, w3, b3)
    return emb, recon


def init_params(key):
    """Deterministic init mimicking nn.Linear's U(-1/sqrt(fan_in), 1/sqrt(fan_in)).

    Weights stored as (in_features, out_features); biases as (1, out_features).
    """
    ks = jax.random.split(key, 6)

    def linear(kw, kb, d_in, d_out):
        bound = 1.0 / jnp.sqrt(jnp.float32(d_in))
        w = jax.random.uniform(kw, (d_in, d_out), jnp.float32, -bound, bound)
        b = jax.random.uniform(kb, (1, d_out), jnp.float32, -bound, bound)
        return w, b

    w1, b1 = linear(ks[0], ks[1], D_IN, D_H)
    w2, b2 = linear(ks[2], ks[3], D_H, D_EMB)
    w3, b3 = linear(ks[4], ks[5], D_IN - 98, D_IN)  # (32 -> 130)
    return (w1, b1, w2, b2, w3, b3)


def reference_forward(x, params):
    """Pure-JAX reference, mirrors the PyTorch f32 forward."""
    w1, b1, w2, b2, w3, b3 = params
    h = jnp.dot(x, w1, preferred_element_type=jnp.float32) + b1
    h = jnp.where(h > 0, h, 0.01 * h)
    emb = jnp.dot(h, w2, preferred_element_type=jnp.float32) + b2
    recon = jnp.dot(emb, w3, preferred_element_type=jnp.float32) + b3
    return emb, recon


if __name__ == "__main__":
    key = jax.random.PRNGKey(0)
    k_param, k_x, k_x2 = jax.random.split(key, 3)

    params = init_params(k_param)

    # --- small-shape smoke test (single tile) ---
    B = 8
    x = jax.random.normal(k_x, (B, D_IN), jnp.float32)

    emb, recon = autoencoder_forward(x, params)
    jax.block_until_ready((emb, recon))
    assert emb.shape == (B, D_EMB) and recon.shape == (B, D_IN)

    emb_r, recon_r = reference_forward(x, params)
    assert jnp.allclose(emb, emb_r, atol=1e-4, rtol=1e-4)
    assert jnp.allclose(recon, recon_r, atol=1e-4, rtol=1e-4)

    # --- multi-tile test (exercises grid pipelining + partial last tile) ---
    B2 = 600  # auto tile -> 256, grid = 3, last tile partially masked
    x2 = jax.random.normal(k_x2, (B2, D_IN), jnp.float32)
    emb2, recon2 = autoencoder_forward(x2, params)
    jax.block_until_ready((emb2, recon2))
    emb2_r, recon2_r = reference_forward(x2, params)
    assert jnp.allclose(emb2, emb2_r, atol=1e-4, rtol=1e-4)
    assert jnp.allclose(recon2, recon2_r, atol=1e-4, rtol=1e-4)

    print("KERNEL_OK")
</pallas_src>

<mosaic_0001>
module attributes {stable_mosaic.version = 11 : i64} {
  func.func @_autoencoder_kernel(%arg0: i32, %arg1: memref<8x130xf32, #tpu.memory_space<vmem>>, %arg2: memref<130x64xf32, #tpu.memory_space<vmem>>, %arg3: memref<1x64xf32, #tpu.memory_space<vmem>>, %arg4: memref<64x32xf32, #tpu.memory_space<vmem>>, %arg5: memref<1x32xf32, #tpu.memory_space<vmem>>, %arg6: memref<32x130xf32, #tpu.memory_space<vmem>>, %arg7: memref<1x130xf32, #tpu.memory_space<vmem>>, %arg8: memref<8x32xf32, #tpu.memory_space<vmem>>, %arg9: memref<8x130xf32, #tpu.memory_space<vmem>>) attributes {dimension_semantics = [#tpu.dimension_semantics<parallel>], iteration_bounds = array<i64: 1>, scalar_prefetch = 0 : i64, scratch_operands = 0 : i64, tpu.core_type = #tpu.core_type<tc>, window_params = [{transform_indices = @transform_0, window_bounds = array<i64: 8, 130>}, {pipeline_mode = #tpu.pipeline_mode<synchronous>, transform_indices = @transform_1, window_bounds = array<i64: 130, 64>}, {pipeline_mode = #tpu.pipeline_mode<synchronous>, transform_indices = @transform_2, window_bounds = array<i64: 1, 64>}, {pipeline_mode = #tpu.pipeline_mode<synchronous>, transform_indices = @transform_3, window_bounds = array<i64: 64, 32>}, {pipeline_mode = #tpu.pipeline_mode<synchronous>, transform_indices = @transform_4, window_bounds = array<i64: 1, 32>}, {pipeline_mode = #tpu.pipeline_mode<synchronous>, transform_indices = @transform_5, window_bounds = array<i64: 32, 130>}, {pipeline_mode = #tpu.pipeline_mode<synchronous>, transform_indices = @transform_6, window_bounds = array<i64: 1, 130>}, {transform_indices = @transform_7, window_bounds = array<i64: 8, 32>}, {transform_indices = @transform_8, window_bounds = array<i64: 8, 130>}]} {
    %c0 = arith.constant 0 : index
    %c0_0 = arith.constant 0 : index
    %0 = vector.load %arg1[%c0, %c0_0] : memref<8x130xf32, #tpu.memory_space<vmem>>, vector<8x130xf32>
    %c0_1 = arith.constant 0 : index
    %c0_2 = arith.constant 0 : index
    %1 = vector.load %arg2[%c0_1, %c0_2] : memref<130x64xf32, #tpu.memory_space<vmem>>, vector<130x64xf32>
    %cst = arith.constant dense<0.000000e+00> : vector<8x64xf32>
    %2 = tpu.matmul %0, %1, %cst {dimension_numbers = #tpu.dot_dimension_numbers<[1], [0], [0], [1], [0, 0, 1, 1], [], []>} : vector<8x130xf32>, vector<130x64xf32>, vector<8x64xf32> -> vector<8x64xf32>
    %c0_3 = arith.constant 0 : index
    %c0_4 = arith.constant 0 : index
    %3 = vector.load %arg3[%c0_3, %c0_4] : memref<1x64xf32, #tpu.memory_space<vmem>>, vector<1x64xf32>
    %4 = vector.broadcast %3 : vector<1x64xf32> to vector<8x64xf32>
    %5 = arith.addf %2, %4 : vector<8x64xf32>
    %cst_5 = arith.constant 0.000000e+00 : f32
    %6 = vector.broadcast %cst_5 : f32 to vector<8x64xf32>
    %7 = arith.cmpf ogt, %5, %6 : vector<8x64xf32>
    %cst_6 = arith.constant 0.00999999977 : f32
    %8 = vector.broadcast %cst_6 : f32 to vector<8x64xf32>
    %9 = arith.mulf %8, %5 : vector<8x64xf32>
    %10 = arith.select %7, %5, %9 : vector<8x64xi1>, vector<8x64xf32>
    %c0_7 = arith.constant 0 : index
    %c0_8 = arith.constant 0 : index
    %11 = vector.load %arg4[%c0_7, %c0_8] : memref<64x32xf32, #tpu.memory_space<vmem>>, vector<64x32xf32>
    %cst_9 = arith.constant dense<0.000000e+00> : vector<8x32xf32>
    %12 = tpu.matmul %10, %11, %cst_9 {dimension_numbers = #tpu.dot_dimension_numbers<[1], [0], [0], [1], [0, 0, 1, 1], [], []>} : vector<8x64xf32>, vector<64x32xf32>, vector<8x32xf32> -> vector<8x32xf32>
    %c0_10 = arith.constant 0 : index
    %c0_11 = arith.constant 0 : index
    %13 = vector.load %arg5[%c0_10, %c0_11] : memref<1x32xf32, #tpu.memory_space<vmem>>, vector<1x32xf32>
    %14 = vector.broadcast %13 : vector<1x32xf32> to vector<8x32xf32>
    %15 = arith.addf %12, %14 : vector<8x32xf32>
    %c0_12 = arith.constant 0 : index
    %c0_13 = arith.constant 0 : index
    %16 = vector.load %arg6[%c0_12, %c0_13] : memref<32x130xf32, #tpu.memory_space<vmem>>, vector<32x130xf32>
    %cst_14 = arith.constant dense<0.000000e+00> : vector<8x130xf32>
    %17 = tpu.matmul %15, %16, %cst_14 {dimension_numbers = #tpu.dot_dimension_numbers<[1], [0], [0], [1], [0, 0, 1, 1], [], []>} : vector<8x32xf32>, vector<32x130xf32>, vector<8x130xf32> -> vector<8x130xf32>
    %c0_15 = arith.constant 0 : index
    %c0_16 = arith.constant 0 : index
    %18 = vector.load %arg7[%c0_15, %c0_16] : memref<1x130xf32, #tpu.memory_space<vmem>>, vector<1x130xf32>
    %19 = vector.broadcast %18 : vector<1x130xf32> to vector<8x130xf32>
    %20 = arith.addf %17, %19 : vector<8x130xf32>
    %c0_17 = arith.constant 0 : index
    %c0_18 = arith.constant 0 : index
    %21 = vector.load %arg8[%c0_17, %c0_18] : memref<8x32xf32, #tpu.memory_space<vmem>>, vector<8x32xf32>
    tpu.vector_store %arg8[%c0_17, %c0_18], %15 {strides = array<i32>} : memref<8x32xf32, #tpu.memory_space<vmem>>, vector<8x32xf32>,
    %c0_19 = arith.constant 0 : index
    %c0_20 = arith.constant 0 : index
    %22 = vector.load %arg9[%c0_19, %c0_20] : memref<8x130xf32, #tpu.memory_space<vmem>>, vector<8x130xf32>
    tpu.vector_store %arg9[%c0_19, %c0_20], %20 {strides = array<i32>} : memref<8x130xf32, #tpu.memory_space<vmem>>, vector<8x130xf32>,
    return
  }
  func.func @transform_0(%arg0: i32) -> (i32, i32) {
    %c0_i32 = arith.constant 0 : i32
    %c0_i32_0 = arith.constant 0 : i32
    return %arg0, %c0_i32 : i32, i32
  }
  func.func @transform_1(%arg0: i32) -> (i32, i32) {
    %c0_i32 = arith.constant 0 : i32
    %c0_i32_0 = arith.constant 0 : i32
    %c0_i32_1 = arith.constant 0 : i32
    return %c0_i32, %c0_i32_0 : i32, i32
  }
  func.func @transform_2(%arg0: i32) -> (i32, i32) {
    %c0_i32 = arith.constant 0 : i32
    %c0_i32_0 = arith.constant 0 : i32
    %c0_i32_1 = arith.constant 0 : i32
    return %c0_i32, %c0_i32_0 : i32, i32
  }
  func.func @transform_3(%arg0: i32) -> (i32, i32) {
    %c0_i32 = arith.constant 0 : i32
    %c0_i32_0 = arith.constant 0 : i32
    %c0_i32_1 = arith.constant 0 : i32
    return %c0_i32, %c0_i32_0 : i32, i32
  }
  func.func @transform_4(%arg0: i32) -> (i32, i32) {
    %c0_i32 = arith.constant 0 : i32
    %c0_i32_0 = arith.constant 0 : i32
    %c0_i32_1 = arith.constant 0 : i32
    return %c0_i32, %c0_i32_0 : i32, i32
  }
  func.func @transform_5(%arg0: i32) -> (i32, i32) {
    %c0_i32 = arith.constant 0 : i32
    %c0_i32_0 = arith.constant 0 : i32
    %c0_i32_1 = arith.constant 0 : i32
    return %c0_i32, %c0_i32_0 : i32, i32
  }
  func.func @transform_6(%arg0: i32) -> (i32, i32) {
    %c0_i32 = arith.constant 0 : i32
    %c0_i32_0 = arith.constant 0 : i32
    %c0_i32_1 = arith.constant 0 : i32
    return %c0_i32, %c0_i32_0 : i32, i32
  }
  func.func @transform_7(%arg0: i32) -> (i32, i32) {
    %c0_i32 = arith.constant 0 : i32
    %c0_i32_0 = arith.constant 0 : i32
    return %arg0, %c0_i32 : i32, i32
  }
  func.func @transform_8(%arg0: i32) -> (i32, i32) {
    %c0_i32 = arith.constant 0 : i32
    %c0_i32_0 = arith.constant 0 : i32
    return %arg0, %c0_i32 : i32, i32
  }
}

</mosaic_0001>

<llo_original>
// kernel: tpu_custom_call.1
$region0: #{tpu_custom_call.1}
  #allocation0 [shape = 'u32[]', space=smem, size = 0x4, offset = 0x4, fixed_abs, tag = 'smem constant byte address 0x4 - core index']
  #allocation1 [shape = 'u32[144,128]{1,0:T(1,128)}', space=vmem, size = 0x12000, scoped, tag = 'internal scratch']
  %s0 = inlined_call_operand.vmem [shape: f32[8,130], index: 0, kind: input, shape index: {}]
  %s1 = inlined_call_operand.vmem [shape: f32[130,64], index: 1, kind: input, shape index: {}]
  %s2 = inlined_call_operand.vmem [shape: f32[1,64], index: 2, kind: input, shape index: {}]
  %s3 = inlined_call_operand.vmem [shape: f32[64,32], index: 3, kind: input, shape index: {}]
  %s4 = inlined_call_operand.vmem [shape: f32[1,32], index: 4, kind: input, shape index: {}]
  %s5 = inlined_call_operand.vmem [shape: f32[32,130], index: 5, kind: input, shape index: {}]
  %s6 = inlined_call_operand.vmem [shape: f32[1,130], index: 6, kind: input, shape index: {}]
  %s7 = inlined_call_operand.hbm [shape: f32[8,32], index: 7, kind: output, shape index: {0}]
  %s8 = inlined_call_operand.hbm [shape: f32[8,130], index: 8, kind: output, shape index: {1}]
  %9 = xla_tuple %s7, %s8
  %s10 = sld [smem:[#allocation0]]
  $region46: #{tpu_custom_call.1} parent=0
    _
  %s12 = ssub.s32 1, %s10
  %s13 = scalar_select 0, %s12, %s10
  $region1: #{tpu_custom_call.1} parent=0
    #allocation2 [shape = 'u8[4096]{0}', space=vmem, size = 0x1000, scoped, tag = 'output window, operand 0, single buffered']
    #allocation3 [shape = 's32[1]{0}', space=sflag, size = 0x4, scoped, tag = 'scoped memory for tpu_custom_call.1']
    #allocation4 [shape = 'u8[8192]{0}', space=vmem, size = 0x2000, scoped, tag = 'output window, operand 1, single buffered']
    #allocation5 [shape = 's32[1]{0}', space=sflag, size = 0x4, scoped, tag = 'scoped memory for tpu_custom_call.1']
    %14 = vsyncpa [#allocation3], 0
    %15 = vsyncpa [#allocation5], 0
    // Predicated region
    $region2: #{tpu_custom_call.1} parent=1 // pred_check
      _
    $region3: #{tpu_custom_call.1} parent=1 // pred_check_branch
      %17 = sbr.rel (0) target = $region5
    $region4: #{tpu_custom_call.1} parent=1 // pred_region
      _
    $region5: #{tpu_custom_call.1} parent=1 // pred_fallthru
      _
    // Predicated region
    $region6: #{tpu_custom_call.1} parent=1 // pred_check
      _
    $region7: #{tpu_custom_call.1} parent=1 // pred_check_branch
      %19 = sbr.rel (0) target = $region9
    $region8: #{tpu_custom_call.1} parent=1 // pred_region
      _
    $region9: #{tpu_custom_call.1} parent=1 // pred_fallthru
      _
    // Predicated region
    $region10: #{tpu_custom_call.1} parent=1 // pred_check
      _
    $region11: #{tpu_custom_call.1} parent=1 // pred_check_branch
      %21 = sbr.rel (0) target = $region13
    $region12: #{tpu_custom_call.1} parent=1 // pred_region
      _
    $region13: #{tpu_custom_call.1} parent=1 // pred_fallthru
      _
    // Predicated region
    $region14: #{tpu_custom_call.1} parent=1 // pred_check
      _
    $region15: #{tpu_custom_call.1} parent=1 // pred_check_branch
      %23 = sbr.rel (0) target = $region17
    $region16: #{tpu_custom_call.1} parent=1 // pred_region
      _
    $region17: #{tpu_custom_call.1} parent=1 // pred_fallthru
      _
    // Predicated region
    $region18: #{tpu_custom_call.1} parent=1 // pred_check
      _
    $region19: #{tpu_custom_call.1} parent=1 // pred_check_branch
      %25 = sbr.rel (0) target = $region21
    $region20: #{tpu_custom_call.1} parent=1 // pred_region
      _
    $region21: #{tpu_custom_call.1} parent=1 // pred_fallthru
      _
    // Predicated region
    $region22: #{tpu_custom_call.1} parent=1 // pred_check
      _
    $region23: #{tpu_custom_call.1} parent=1 // pred_check_branch
      %27 = sbr.rel (0) target = $region25
    $region24: #{tpu_custom_call.1} parent=1 // pred_region
      _
    $region25: #{tpu_custom_call.1} parent=1 // pred_fallthru
      _
    // Predicated region
    $region26: #{tpu_custom_call.1} parent=1 // pred_check
      _
    $region27: #{tpu_custom_call.1} parent=1 // pred_check_branch
      %29 = sbr.rel (0) target = $region29
    $region28: #{tpu_custom_call.1} parent=1 // pred_region
      _
    $region29: #{tpu_custom_call.1} parent=1 // pred_fallthru
      _
    %v30 = vld [vmem:[%s0] sm:$0xff]
    %v31 = vld [vmem:[%s0 + $0x8] sm:$0xff]
    %v32 = vld [vmem:[%s1] sm:$0xff]
    %v33 = vld [vmem:[%s1 + $0x8] sm:$0xff]
    %v34 = vld [vmem:[%s1 + $0x10] sm:$0xff]
    %v35 = vld [vmem:[%s1 + $0x18] sm:$0xff]
    %v36 = vld [vmem:[%s1 + $0x20] sm:$0xff]
    %v37 = vld [vmem:[%s1 + $0x28] sm:$0xff]
    %v38 = vld [vmem:[%s1 + $0x30] sm:$0xff]
    %v39 = vld [vmem:[%s1 + $0x38] sm:$0xff]
    %v40 = vld [vmem:[%s1 + $0x40] sm:$0xff]
    %v41 = vld [vmem:[%s1 + $0x48] sm:$0xff]
    %v42 = vld [vmem:[%s1 + $0x50] sm:$0xff]
    %v43 = vld [vmem:[%s1 + $0x58] sm:$0xff]
    %v44 = vld [vmem:[%s1 + $0x60] sm:$0xff]
    %v45 = vld [vmem:[%s1 + $0x68] sm:$0xff]
    %v46 = vld [vmem:[%s1 + $0x70] sm:$0xff]
    %v47 = vld [vmem:[%s1 + $0x78] sm:$0xff]
    %v48 = vld [vmem:[%s1 + $0x80] sm:$0x3]
    %v49 = vld [vmem:[%s2] sm:$0x1]
    %v51 = vlaneseq
    %v52 = vshrl.u32 %v51, 7
    %v53 = vsub.s32 0, %v52
    %v54 = vrot.slane %v49, %v53
    %vm56 = vcmask 15360
    %v58 = vsel %vm56, %v31, 0
    %vm60 = vcmask 1041408
    %v62 = vsel %vm60, %v48, 0
    %64 = vmatprep.subr.mxu0 0.0
    %65 = vmatpush1.msra.mxu0 %v32
    %66 = vmatprep.subr.mxu0 0.0
    %67 = vmatpush1.msra.mxu0 %v33
    %68 = vmatprep.subr.mxu0 0.0
    %69 = vmatpush1.msra.mxu0 %v34
    %70 = vmatprep.subr.mxu0 0.0
    %71 = vmatpush1.msra.mxu0 %v35
    %72 = vmatprep.subr.mxu0 0.0
    %73 = vmatpush1.msra.mxu0 %v36
    %74 = vmatprep.subr.mxu0 0.0
    %75 = vmatpush1.msra.mxu0 %v37
    %76 = vmatprep.subr.mxu0 0.0
    %77 = vmatpush1.msra.mxu0 %v38
    %78 = vmatprep.subr.mxu0 0.0
    %79 = vmatpush1.msra.mxu0 %v39
    %80 = vmatprep.subr.mxu0 0.0
    %81 = vmatpush1.msra.mxu0 %v40
    %82 = vmatprep.subr.mxu0 0.0
    %83 = vmatpush1.msra.mxu0 %v41
    %84 = vmatprep.subr.mxu0 0.0
    %85 = vmatpush1.msra.mxu0 %v42
    %86 = vmatprep.subr.mxu0 0.0
    %87 = vmatpush1.msra.mxu0 %v43
    %88 = vmatprep.subr.mxu0 0.0
    %89 = vmatpush1.msra.mxu0 %v44
    %90 = vmatprep.subr.mxu0 0.0
    %91 = vmatpush1.msra.mxu0 %v45
    %92 = vmatprep.subr.mxu0 0.0
    %93 = vmatpush1.msra.mxu0 %v46
    %94 = vmatprep.subr.mxu0 0.0
    %95 = vmatpush1.msra.mxu0 %v47
    %96 = vmatprep.subr.mxu0 0.0
    %97 = vmatpush1.msra.mxu0 %v62
    %98 = vmatprep.subr.mxu0 0.0
    %99 = vmatpush1.msra.mxu0 0.0
    %100 = vmatprep.subr.mxu0 0.0
    %101 = vmatpush1.msra.mxu0 0.0
    %102 = vmatprep.subr.mxu0 0.0
    %103 = vmatpush1.msra.mxu0 0.0
    %104 = vmatprep.subr.mxu0 0.0
    %105 = vmatpush1.msra.mxu0 0.0
    %106 = vmatprep.subr.mxu0 0.0
    %107 = vmatpush1.msra.mxu0 0.0
    %108 = vmatprep.subr.mxu0 0.0
    %109 = vmatpush1.msra.mxu0 0.0
    %110 = vmatprep.subr.mxu0 0.0
    %111 = vmatpush1.msra.mxu0 0.0
    %112 = vmatprep.subr.mxu0 0.0
    %113 = vmatpush1.msra.mxu0 0.0
    %114 = vmatprep.subr.mxu0 0.0
    %115 = vmatpush1.msra.mxu0 0.0
    %116 = vmatprep.subr.mxu0 0.0
    %117 = vmatpush1.msra.mxu0 0.0
    %118 = vmatprep.subr.mxu0 0.0
    %119 = vmatpush1.msra.mxu0 0.0
    %120 = vmatprep.subr.mxu0 0.0
    %121 = vmatpush1.msra.mxu0 0.0
    %122 = vmatprep.subr.mxu0 0.0
    %123 = vmatpush1.msra.mxu0 0.0
    %124 = vmatprep.subr.mxu0 0.0
    %125 = vmatpush1.msra.mxu0 0.0
    %126 = vmatprep.subr.mxu0 0.0
    %127 = vmatpush1.msra.mxu0 0.0
    %128 = vmatprep.mubr.f32.mxu0 %v58
    %129 = vmatmul.mubr.f32.gmra.mrb[0].mxu0 %v30
    %v130 = vpop.f32.mrb[0].mxu0
    %v131 = vadd.f32 %v54, %v130
    %v132 = vpop.f32.mrb[0].mxu0
    %133 = vdwg.mxu0
    %vm134 = vcmp.gt.f32.partialorder %v131, 0.0
    %v135 = vmul.f32 %v131, 0.01
    %v136 = vsel %vm134, %v131, %v135
    %v137 = vld [vmem:[%s3] sm:$0xff]
    %v138 = vld [vmem:[%s3 + $0x8] sm:$0xff]
    %v139 = vld [vmem:[%s3 + $0x10] sm:$0xff]
    %v140 = vld [vmem:[%s3 + $0x18] sm:$0xff]
    %v141 = vld [vmem:[%s3 + $0x20] sm:$0xff]
    %v142 = vld [vmem:[%s3 + $0x28] sm:$0xff]
    %v143 = vld [vmem:[%s3 + $0x30] sm:$0xff]
    %v144 = vld [vmem:[%s3 + $0x38] sm:$0xff]
    %v145 = vld [vmem:[%s4] sm:$0x1]
    %v147 = vlaneseq
    %v148 = vshrl.u32 %v147, 7
    %v149 = vsub.s32 0, %v148
    %v150 = vrot.slane %v145, %v149
    %vm152 = vcmask 523264
    %v154 = vsel %vm152, %v136, 0
    %156 = vmatprep.subr.mxu0 0.0
    %157 = vmatpush1.msra.mxu0 %v137
    %158 = vmatprep.subr.mxu0 0.0
    %159 = vmatpush1.msra.mxu0 %v138
    %160 = vmatprep.subr.mxu0 0.0
    %161 = vmatpush1.msra.mxu0 %v139
    %162 = vmatprep.subr.mxu0 0.0
    %163 = vmatpush1.msra.mxu0 %v140
    %164 = vmatprep.subr.mxu0 0.0
    %165 = vmatpush1.msra.mxu0 %v141
    %166 = vmatprep.subr.mxu0 0.0
    %167 = vmatpush1.msra.mxu0 %v142
    %168 = vmatprep.subr.mxu0 0.0
    %169 = vmatpush1.msra.mxu0 %v143
    %170 = vmatprep.subr.mxu0 0.0
    %171 = vmatpush1.msra.mxu0 %v144
    %172 = vmatprep.subr.mxu0 0.0
    %173 = vmatpush1.msra.mxu0 0.0
    %174 = vmatprep.subr.mxu0 0.0
    %175 = vmatpush1.msra.mxu0 0.0
    %176 = vmatprep.subr.mxu0 0.0
    %177 = vmatpush1.msra.mxu0 0.0
    %178 = vmatprep.subr.mxu0 0.0
    %179 = vmatpush1.msra.mxu0 0.0
    %180 = vmatprep.subr.mxu0 0.0
    %181 = vmatpush1.msra.mxu0 0.0
    %182 = vmatprep.subr.mxu0 0.0
    %183 = vmatpush1.msra.mxu0 0.0
    %184 = vmatprep.subr.mxu0 0.0
    %185 = vmatpush1.msra.mxu0 0.0
    %186 = vmatprep.subr.mxu0 0.0
    %187 = vmatpush1.msra.mxu0 0.0
    %188 = vmatprep.subr.mxu0 0.0
    %189 = vmatpush1.msra.mxu0 0.0
    %190 = vmatprep.subr.mxu0 0.0
    %191 = vmatpush1.msra.mxu0 0.0
    %192 = vmatprep.subr.mxu0 0.0
    %193 = vmatpush1.msra.mxu0 0.0
    %194 = vmatprep.subr.mxu0 0.0
    %195 = vmatpush1.msra.mxu0 0.0
    %196 = vmatprep.subr.mxu0 0.0
    %197 = vmatpush1.msra.mxu0 0.0
    %198 = vmatprep.subr.mxu0 0.0
    %199 = vmatpush1.msra.mxu0 0.0
    %200 = vmatprep.subr.mxu0 0.0
    %201 = vmatpush1.msra.mxu0 0.0
    %202 = vmatprep.subr.mxu0 0.0
    %203 = vmatpush1.msra.mxu0 0.0
    %204 = vmatprep.subr.mxu0 0.0
    %205 = vmatpush1.msra.mxu0 0.0
    %206 = vmatprep.subr.mxu0 0.0
    %207 = vmatpush1.msra.mxu0 0.0
    %208 = vmatprep.subr.mxu0 0.0
    %209 = vmatpush1.msra.mxu0 0.0
    %210 = vmatprep.subr.mxu0 0.0
    %211 = vmatpush1.msra.mxu0 0.0
    %212 = vmatprep.subr.mxu0 0.0
    %213 = vmatpush1.msra.mxu0 0.0
    %214 = vmatprep.subr.mxu0 0.0
    %215 = vmatpush1.msra.mxu0 0.0
    %216 = vmatprep.subr.mxu0 0.0
    %217 = vmatpush1.msra.mxu0 0.0
    %218 = vmatprep.subr.mxu0 0.0
    %219 = vmatpush1.msra.mxu0 0.0
    %220 = vmatprep.mubr.f32.mxu0 0.0
    %221 = vmatmul.mubr.f32.gmra.mrb[0].mxu0 %v154
    %v222 = vpop.f32.mrb[0].mxu0
    %v223 = vadd.f32 %v150, %v222
    %v224 = vpop.f32.mrb[0].mxu0
    %225 = vdwg.mxu0
    %v226 = vld [vmem:[%s5] sm:$0xff]
    %v227 = vld [vmem:[%s5 + $0x8] sm:$0xff]
    %v228 = vld [vmem:[%s5 + $0x10] sm:$0xff]
    %v229 = vld [vmem:[%s5 + $0x18] sm:$0xff]
    %v230 = vld [vmem:[%s5 + $0x20] sm:$0xff]
    %v231 = vld [vmem:[%s5 + $0x28] sm:$0xff]
    %v232 = vld [vmem:[%s5 + $0x30] sm:$0xff]
    %v233 = vld [vmem:[%s5 + $0x38] sm:$0xff]
    %v234 = vld [vmem:[%s6] sm:$0x3]
    %v236 = vlaneseq
    %v237 = vshrl.u32 %v236, 7
    %v238 = vsub.s32 0, %v237
    %v239 = vrot.slane %v234, %v238
    %v240 = vlaneseq
    %v241 = vshrl.u32 %v240, 7
    %v242 = vsub.s32 1, %v241
    %v243 = vrot.slane %v234, %v242
    %vm246 = vcmask 261120
    %v248 = vsel %vm246, %v223, 0
    %250 = vmatprep.subr.mxu0 %v227
    %251 = vmatpush1.msra.mxu0 %v226
    %252 = vmatprep.subr.mxu0 %v229
    %253 = vmatpush1.msra.mxu0 %v228
    %254 = vmatprep.subr.mxu0 %v231
    %255 = vmatpush1.msra.mxu0 %v230
    %256 = vmatprep.subr.mxu0 %v233
    %257 = vmatpush1.msra.mxu0 %v232
    %258 = vmatprep.subr.mxu0 0.0
    %259 = vmatpush1.msra.mxu0 0.0
    %260 = vmatprep.subr.mxu0 0.0
    %261 = vmatpush1.msra.mxu0 0.0
    %262 = vmatprep.subr.mxu0 0.0
    %263 = vmatpush1.msra.mxu0 0.0
    %264 = vmatprep.subr.mxu0 0.0
    %265 = vmatpush1.msra.mxu0 0.0
    %266 = vmatprep.subr.mxu0 0.0
    %267 = vmatpush1.msra.mxu0 0.0
    %268 = vmatprep.subr.mxu0 0.0
    %269 = vmatpush1.msra.mxu0 0.0
    %270 = vmatprep.subr.mxu0 0.0
    %271 = vmatpush1.msra.mxu0 0.0
    %272 = vmatprep.subr.mxu0 0.0
    %273 = vmatpush1.msra.mxu0 0.0
    %274 = vmatprep.subr.mxu0 0.0
    %275 = vmatpush1.msra.mxu0 0.0
    %276 = vmatprep.subr.mxu0 0.0
    %277 = vmatpush1.msra.mxu0 0.0
    %278 = vmatprep.subr.mxu0 0.0
    %279 = vmatpush1.msra.mxu0 0.0
    %280 = vmatprep.subr.mxu0 0.0
    %281 = vmatpush1.msra.mxu0 0.0
    %282 = vmatprep.subr.mxu0 0.0
    %283 = vmatpush1.msra.mxu0 0.0
    %284 = vmatprep.subr.mxu0 0.0
    %285 = vmatpush1.msra.mxu0 0.0
    %286 = vmatprep.subr.mxu0 0.0
    %287 = vmatpush1.msra.mxu0 0.0
    %288 = vmatprep.subr.mxu0 0.0
    %289 = vmatpush1.msra.mxu0 0.0
    %290 = vmatprep.subr.mxu0 0.0
    %291 = vmatpush1.msra.mxu0 0.0
    %292 = vmatprep.subr.mxu0 0.0
    %293 = vmatpush1.msra.mxu0 0.0
    %294 = vmatprep.subr.mxu0 0.0
    %295 = vmatpush1.msra.mxu0 0.0
    %296 = vmatprep.subr.mxu0 0.0
    %297 = vmatpush1.msra.mxu0 0.0
    %298 = vmatprep.subr.mxu0 0.0
    %299 = vmatpush1.msra.mxu0 0.0
    %300 = vmatprep.subr.mxu0 0.0
    %301 = vmatpush1.msra.mxu0 0.0
    %302 = vmatprep.subr.mxu0 0.0
    %303 = vmatpush1.msra.mxu0 0.0
    %304 = vmatprep.subr.mxu0 0.0
    %305 = vmatpush1.msra.mxu0 0.0
    %306 = vmatprep.subr.mxu0 0.0
    %307 = vmatpush1.msra.mxu0 0.0
    %308 = vmatprep.subr.mxu0 0.0
    %309 = vmatpush1.msra.mxu0 0.0
    %310 = vmatprep.subr.mxu0 0.0
    %311 = vmatpush1.msra.mxu0 0.0
    %312 = vmatprep.subr.mxu0 0.0
    %313 = vmatpush1.msra.mxu0 0.0
    %314 = vmatprep.mubr.f32.mxu0 0.0
    %315 = vmatmul.mubr.f32.gmra.mrb[0].mxu0 %v248
    %v316 = vpop.f32.mrb[0].mxu0
    %v317 = vadd.f32 %v239, %v316
    %v318 = vpop.f32.mrb[0].mxu0
    %v319 = vadd.f32 %v243, %v318
    %320 = vdwg.mxu0
    %321 = vst.msk [vmem:[#allocation2] sm:$0xff] %vm246, %v223
    %322 = vst [vmem:[#allocation4] sm:$0xff] %v317
    %323 = vst.msk [vmem:[#allocation4 + $0x8] sm:$0xff] %vm56, %v319
    // Predicated region
    $region30: #{tpu_custom_call.1} parent=1 // pred_check
      _
    $region31: #{tpu_custom_call.1} parent=1 // pred_check_branch
      %325 = sbr.rel (0) target = $region33
    $region32: #{tpu_custom_call.1} parent=1 // pred_region
      %s327 = ssub.s32 128, 128
      %328 = vsyncadd [#allocation3], %s327
      %s330 = sshll.u32 [#allocation2], 4
      %s331 = int_to_ptr.vmem [resolvable:$true] %s330
      %333 = dma.vmem_to_hbm [thread:$0]  %s331, 128, %s7, [#allocation3]
    $region33: #{tpu_custom_call.1} parent=1 // pred_fallthru
      _
    // Predicated region
    $region34: #{tpu_custom_call.1} parent=1 // pred_check
      _
    $region35: #{tpu_custom_call.1} parent=1 // pred_check_branch
      %335 = sbr.rel (0) target = $region37
    $region36: #{tpu_custom_call.1} parent=1 // pred_region
      %s337 = ssub.s32 256, 256
      %338 = vsyncadd [#allocation5], %s337
      %s340 = sshll.u32 [#allocation4], 4
      %s341 = int_to_ptr.vmem [resolvable:$true] %s340
      %343 = dma.vmem_to_hbm [thread:$0]  %s341, 256, %s8, [#allocation5]
    $region37: #{tpu_custom_call.1} parent=1 // pred_fallthru
      _
    // Predicated region
    $region38: #{tpu_custom_call.1} parent=1 // pred_check
      _
    $region39: #{tpu_custom_call.1} parent=1 // pred_check_branch
      %345 = sbr.rel (0) target = $region41
    $region40: #{tpu_custom_call.1} parent=1 // pred_region
      %346 = dma.done [#allocation3], 128
    $region41: #{tpu_custom_call.1} parent=1 // pred_fallthru
      _
    // Predicated region
    $region42: #{tpu_custom_call.1} parent=1 // pred_check
      _
    $region43: #{tpu_custom_call.1} parent=1 // pred_check_branch
      %348 = sbr.rel (0) target = $region45
    $region44: #{tpu_custom_call.1} parent=1 // pred_region
      %349 = dma.done [#allocation5], 256
    $region45: #{tpu_custom_call.1} parent=1 // pred_fallthru
      _
    %350 = vsyncpa [#allocation3], 1
    %351 = vsyncpa [#allocation5], 1

</llo_original>
